<compile_context>
chip_gen: v5e
topology: v5e:2x2
jax: 0.10.0
libtpu: 0.0.40
codegen_flags: <defaults>
</compile_context>

<pallas_src>
import jax
import jax.numpy as jnp
from jax.experimental import pallas as pl
from jax.experimental.pallas import tpu as pltpu


# Grid axis sharded across TensorCores (v7x megacore). No-op on 1-TC chips.
_NUM_PARALLEL = 2


def _int_pow_or_pow(x, gamma):
    """x**gamma as a VALU multiply chain for small non-negative integer gamma."""
    g = float(gamma)
    if g == int(g) and 0 <= int(g) <= 8:
        gi = int(g)
        if gi == 0:
            return jnp.ones_like(x)
        out = x
        for _ in range(gi - 1):
            out = out * x
        return out
    return x ** g


def _make_focal_loss_kernel(alpha, gamma, n_rows, tile_n, inner_tiles):
    alpha = float(alpha)

    def kernel(logits_ref, targets_ref, weights_ref, out_ref, acc_ref):
        p = pl.program_id(0)       # parallel axis (megacore shard)
        k = pl.program_id(1)       # reduction axis (streamed tiles)

        @pl.when(k == 0)
        def _():
            acc_ref[...] = jnp.zeros_like(acc_ref)

        x = logits_ref[...].astype(jnp.float32)        # [T, C]
        t = targets_ref[...]                           # [T, 1] int32
        w = weights_ref[...].astype(jnp.float32)       # [1, C]

        # Numerically stable log-softmax over classes.  All reductions here are
        # per-row, so garbage in padded/ragged rows cannot contaminate valid
        # rows; it gets zeroed by the final per-row mask below.
        m = jnp.max(x, axis=-1, keepdims=True)         # [T, 1]
        shifted = x - m                                 # [T, C]
        lse = jnp.log(jnp.sum(jnp.exp(shifted), axis=-1, keepdims=True))
        logp = shifted - lse                            # [T, C]

        # Fused gather: ce_i = -w[t_i] * logp_i[t_i] as one masked cross-lane
        # reduction (no one-hot materialization, no extra cast/multiply).
        iota_c = jax.lax.broadcasted_iota(jnp.int32, x.shape, 1)
        ce = -jnp.sum(jnp.where(iota_c == t, w * logp, 0.0),
                      axis=-1, keepdims=True)           # [T, 1]

        pt = jnp.exp(-ce)                               # [T, 1]
        one_minus_pt = jnp.maximum(1.0 - pt, 0.0)       # guard fractional gamma
        focal = alpha * _int_pow_or_pow(one_minus_pt, gamma) * ce

        # Zero rows past N (ragged tail + clamped duplicate tiles). [T,1] only.
        tile_idx = p * inner_tiles + k
        row = jax.lax.broadcasted_iota(jnp.int32, (tile_n, 1), 0)
        valid = (tile_idx * tile_n + row) < n_rows
        focal = jnp.where(valid, focal, 0.0)

        # Running per-core sum (VMEM scratch persists across the inner axis).
        acc_ref[...] = acc_ref[...] + jnp.sum(focal, axis=0, keepdims=True)

        @pl.when(k == pl.num_programs(1) - 1)
        def _():
            out_ref[...] = acc_ref[...].reshape(1, 1, 1)

    return kernel


def _choose_tile_n(n, c, itemsize):
    """Largest row tile such that (logits + targets) per buffer ~= 8 MiB of VMEM.

    Uses the *padded* VMEM footprint: the class dim pads to a 128-lane tile and
    the (T,1) int32 targets block also occupies a full 128-lane tile per row.
    Double-buffered total stays well under the 32 MiB scoped limit we request.
    """
    c_pad = pl.cdiv(c, 128) * 128
    logits_row_bytes = c_pad * itemsize
    targets_row_bytes = 128 * 4
    budget_bytes = 8 * 1024 * 1024
    sub = 16 if itemsize < 4 else 8          # bf16 packs 2 rows / sublane
    tile = budget_bytes // (logits_row_bytes + targets_row_bytes)
    tile = max(sub, (tile // sub) * sub)
    if n <= tile:
        return int(n)                         # single full block (always legal)
    return int(tile)


def focal_loss(logits, targets, class_weights, alpha=1.0, gamma=2.0, tile_n=None):
    """logits: [N, C] float (f32 or bf16); targets: [N] int; class_weights: [C]."""
    n, c = logits.shape
    if tile_n is None:
        tile_n = _choose_tile_n(n, c, logits.dtype.itemsize)
    tile_n = int(tile_n)

    total_tiles = pl.cdiv(n, tile_n)
    num_parallel = min(_NUM_PARALLEL, total_tiles)
    inner_tiles = pl.cdiv(total_tiles, num_parallel)
    last_tile = total_tiles - 1

    # Clamp so a fully-out-of-range (p, k) re-reads the last real tile instead
    # of DMA-ing past the array; its rows are masked to zero in the kernel.
    def tile_map(p, k):
        return (jnp.minimum(p * inner_tiles + k, last_tile), 0)

    targets2d = targets.reshape(n, 1).astype(jnp.int32)
    weights2d = class_weights.reshape(1, c)

    kernel = _make_focal_loss_kernel(alpha, gamma, n, tile_n, inner_tiles)

    partials = pl.pallas_call(
        kernel,
        out_shape=jax.ShapeDtypeStruct((num_parallel, 1, 1), jnp.float32),
        grid=(num_parallel, inner_tiles),
        in_specs=[
            pl.BlockSpec((tile_n, c), tile_map),          # logits (streamed)
            pl.BlockSpec((tile_n, 1), tile_map),          # targets (streamed)
            pl.BlockSpec((1, c), lambda p, k: (0, 0)),    # class weights (resident)
        ],
        out_specs=pl.BlockSpec((1, 1, 1), lambda p, k: (p, 0, 0)),
        scratch_shapes=[pltpu.VMEM((1, 1), jnp.float32)],  # per-core running sum
        compiler_params=pltpu.CompilerParams(
            dimension_semantics=("parallel", "arbitrary"),
            vmem_limit_bytes=32 * 1024 * 1024,
        ),
    )(logits, targets2d, weights2d)

    # Tiny cross-core reduction + mean in the wrapper.
    return jnp.sum(partials) / jnp.float32(n)


def _focal_loss_ref(logits, targets, class_weights, alpha=1.0, gamma=2.0):
    logp = jax.nn.log_softmax(logits.astype(jnp.float32), axis=-1)
    tgt_logp = jnp.take_along_axis(logp, targets[:, None], axis=-1)[:, 0]
    wt = class_weights.astype(jnp.float32)[targets]
    ce = -wt * tgt_logp
    pt = jnp.exp(-ce)
    return jnp.mean(alpha * (1.0 - pt) ** gamma * ce)


if __name__ == "__main__":
    key = jax.random.PRNGKey(0)
    k1, k2 = jax.random.split(key)

    # Small shapes; N=30 with tile_n=8 exercises the 2-D grid, the multi-tile
    # streaming path, and the ragged last tile.
    N, C = 30, 8
    logits = jax.random.normal(k1, (N, C), dtype=jnp.float32)
    targets = jax.random.randint(k2, (N,), 0, C, dtype=jnp.int32)
    class_weights = jnp.linspace(0.5, 1.5, C, dtype=jnp.float32)

    alpha, gamma = 1.0, 2.0

    loss = focal_loss(logits, targets, class_weights,
                      alpha=alpha, gamma=gamma, tile_n=8)
    loss = jax.block_until_ready(loss)

    ref = _focal_loss_ref(logits, targets, class_weights, alpha=alpha, gamma=gamma)
    assert jnp.allclose(loss, ref, rtol=1e-5, atol=1e-5), (loss, ref)

    print("KERNEL_OK")
</pallas_src>

<mosaic_0001>
module attributes {stable_mosaic.version = 11 : i64} {
  func.func @kernel(%arg0: i32, %arg1: i32, %arg2: memref<8x8xf32, #tpu.memory_space<vmem>>, %arg3: memref<8x1xi32, #tpu.memory_space<vmem>>, %arg4: memref<1x8xf32, #tpu.memory_space<vmem>>, %arg5: memref<1x1x1xf32, #tpu.memory_space<vmem>>, %arg6: memref<1x1xf32, #tpu.memory_space<vmem>>) attributes {dimension_semantics = [#tpu.dimension_semantics<parallel>, #tpu.dimension_semantics<arbitrary>], iteration_bounds = array<i64: 2, 2>, scalar_prefetch = 0 : i64, scratch_operands = 1 : i64, tpu.core_type = #tpu.core_type<tc>, window_params = [{transform_indices = @transform_0, window_bounds = array<i64: 8, 8>}, {transform_indices = @transform_1, window_bounds = array<i64: 8, 1>}, {pipeline_mode = #tpu.pipeline_mode<synchronous>, transform_indices = @transform_2, window_bounds = array<i64: 1, 8>}, {transform_indices = @transform_3, window_bounds = array<i64: 1, 1, 1>}]} {
    %c0_i32 = arith.constant 0 : i32
    %0 = arith.cmpi eq, %arg1, %c0_i32 : i32
    %1 = arith.extui %0 : i1 to i32
    %c0_i32_0 = arith.constant 0 : i32
    %2 = arith.cmpi ne, %1, %c0_i32_0 : i32
    scf.if %2 {
      %cst_21 = arith.constant 0.000000e+00 : f32
      %56 = vector.broadcast %cst_21 : f32 to vector<1x1xf32>
      %c0_22 = arith.constant 0 : index
      %c0_23 = arith.constant 0 : index
      %57 = vector.load %arg6[%c0_22, %c0_23] : memref<1x1xf32, #tpu.memory_space<vmem>>, vector<1x1xf32>
      tpu.vector_store %arg6[%c0_22, %c0_23], %56 {strides = array<i32>} : memref<1x1xf32, #tpu.memory_space<vmem>>, vector<1x1xf32>,
    } else {
    }
    %c0 = arith.constant 0 : index
    %c0_1 = arith.constant 0 : index
    %3 = vector.load %arg2[%c0, %c0_1] : memref<8x8xf32, #tpu.memory_space<vmem>>, vector<8x8xf32>
    %c0_2 = arith.constant 0 : index
    %c0_3 = arith.constant 0 : index
    %4 = vector.load %arg3[%c0_2, %c0_3] : memref<8x1xi32, #tpu.memory_space<vmem>>, vector<8x1xi32>
    %c0_4 = arith.constant 0 : index
    %c0_5 = arith.constant 0 : index
    %5 = vector.load %arg4[%c0_4, %c0_5] : memref<1x8xf32, #tpu.memory_space<vmem>>, vector<1x8xf32>
    %cst = arith.constant dense<0xFF800000> : vector<8xf32>
    %6 = vector.multi_reduction <maximumf>, %3, %cst [1] : vector<8x8xf32> to vector<8xf32>
    %7 = vector.shape_cast %6 : vector<8xf32> to vector<8x1xf32>
    %8 = vector.broadcast %7 : vector<8x1xf32> to vector<8x8xf32>
    %9 = arith.subf %3, %8 : vector<8x8xf32>
    %10 = math.exp %9 : vector<8x8xf32>
    %cst_6 = arith.constant dense<0.000000e+00> : vector<8xf32>
    %11 = vector.multi_reduction <add>, %10, %cst_6 [1] : vector<8x8xf32> to vector<8xf32>
    %12 = vector.shape_cast %11 : vector<8xf32> to vector<8x1xf32>
    %13 = math.log %12 : vector<8x1xf32>
    %14 = vector.broadcast %13 : vector<8x1xf32> to vector<8x8xf32>
    %15 = arith.subf %9, %14 : vector<8x8xf32>
    %16 = tpu.iota {dimensions = array<i32: 1>} : vector<8x8xi32>
    %17 = vector.broadcast %4 : vector<8x1xi32> to vector<8x8xi32>
    %18 = arith.cmpi eq, %16, %17 : vector<8x8xi32>
    %19 = vector.broadcast %5 : vector<1x8xf32> to vector<8x8xf32>
    %20 = arith.mulf %19, %15 : vector<8x8xf32>
    %cst_7 = arith.constant 0.000000e+00 : f32
    %21 = vector.broadcast %cst_7 : f32 to vector<8x8xf32>
    %22 = arith.select %18, %20, %21 : vector<8x8xi1>, vector<8x8xf32>
    %cst_8 = arith.constant dense<0.000000e+00> : vector<8xf32>
    %23 = vector.multi_reduction <add>, %22, %cst_8 [1] : vector<8x8xf32> to vector<8xf32>
    %24 = vector.shape_cast %23 : vector<8xf32> to vector<8x1xf32>
    %cst_9 = arith.constant 0.000000e+00 : f32
    %25 = vector.broadcast %cst_9 : f32 to vector<8x1xf32>
    %26 = arith.subf %25, %24 : vector<8x1xf32>
    %cst_10 = arith.constant 0.000000e+00 : f32
    %27 = vector.broadcast %cst_10 : f32 to vector<8x1xf32>
    %28 = arith.subf %27, %26 : vector<8x1xf32>
    %29 = math.exp %28 : vector<8x1xf32>
    %cst_11 = arith.constant 1.000000e+00 : f32
    %30 = vector.broadcast %cst_11 : f32 to vector<8x1xf32>
    %31 = arith.subf %30, %29 : vector<8x1xf32>
    %cst_12 = arith.constant 0.000000e+00 : f32
    %32 = vector.broadcast %cst_12 : f32 to vector<8x1xf32>
    %33 = arith.maximumf %31, %32 : vector<8x1xf32>
    %34 = arith.mulf %33, %33 : vector<8x1xf32>
    %cst_13 = arith.constant 1.000000e+00 : f32
    %35 = vector.broadcast %cst_13 : f32 to vector<8x1xf32>
    %36 = arith.mulf %35, %34 : vector<8x1xf32>
    %37 = arith.mulf %36, %26 : vector<8x1xf32>
    %c2_i32 = arith.constant 2 : i32
    %38 = arith.muli %arg0, %c2_i32 : i32
    %39 = arith.addi %38, %arg1 : i32
    %40 = tpu.iota {dimensions = array<i32: 0>} : vector<8x1xi32>
    %c8_i32 = arith.constant 8 : i32
    %41 = arith.muli %39, %c8_i32 : i32
    %42 = vector.broadcast %41 : i32 to vector<8x1xi32>
    %43 = arith.addi %42, %40 : vector<8x1xi32>
    %c30_i32 = arith.constant 30 : i32
    %44 = vector.broadcast %c30_i32 : i32 to vector<8x1xi32>
    %45 = arith.cmpi slt, %43, %44 : vector<8x1xi32>
    %cst_14 = arith.constant 0.000000e+00 : f32
    %46 = vector.broadcast %cst_14 : f32 to vector<8x1xf32>
    %47 = arith.select %45, %37, %46 : vector<8x1xi1>, vector<8x1xf32>
    %c0_15 = arith.constant 0 : index
    %c0_16 = arith.constant 0 : index
    %48 = vector.load %arg6[%c0_15, %c0_16] : memref<1x1xf32, #tpu.memory_space<vmem>>, vector<1x1xf32>
    %cst_17 = arith.constant dense<0.000000e+00> : vector<1xf32>
    %49 = vector.multi_reduction <add>, %47, %cst_17 [0] : vector<8x1xf32> to vector<1xf32>
    %50 = vector.shape_cast %49 : vector<1xf32> to vector<1x1xf32>
    %51 = arith.addf %48, %50 : vector<1x1xf32>
    %c0_18 = arith.constant 0 : index
    %c0_19 = arith.constant 0 : index
    %52 = vector.load %arg6[%c0_18, %c0_19] : memref<1x1xf32, #tpu.memory_space<vmem>>, vector<1x1xf32>
    tpu.vector_store %arg6[%c0_18, %c0_19], %51 {strides = array<i32>} : memref<1x1xf32, #tpu.memory_space<vmem>>, vector<1x1xf32>,
    %c1_i32 = arith.constant 1 : i32
    %53 = arith.cmpi eq, %arg1, %c1_i32 : i32
    %54 = arith.extui %53 : i1 to i32
    %c0_i32_20 = arith.constant 0 : i32
    %55 = arith.cmpi ne, %54, %c0_i32_20 : i32
    scf.if %55 {
      %c0_21 = arith.constant 0 : index
      %c0_22 = arith.constant 0 : index
      %56 = vector.load %arg6[%c0_21, %c0_22] : memref<1x1xf32, #tpu.memory_space<vmem>>, vector<1x1xf32>
      %57 = vector.shape_cast %56 : vector<1x1xf32> to vector<1x1x1xf32>
      %c0_23 = arith.constant 0 : index
      %c0_24 = arith.constant 0 : index
      %c0_25 = arith.constant 0 : index
      %58 = vector.load %arg5[%c0_23, %c0_24, %c0_25] : memref<1x1x1xf32, #tpu.memory_space<vmem>>, vector<1x1x1xf32>
      tpu.vector_store %arg5[%c0_23, %c0_24, %c0_25], %57 {strides = array<i32>} : memref<1x1x1xf32, #tpu.memory_space<vmem>>, vector<1x1x1xf32>,
    } else {
    }
    return
  }
  func.func @transform_0(%arg0: i32, %arg1: i32) -> (i32, i32) {
    %c2_i32 = arith.constant 2 : i32
    %0 = arith.muli %arg0, %c2_i32 : i32
    %1 = arith.addi %0, %arg1 : i32
    %c3_i32 = arith.constant 3 : i32
    %2 = arith.minsi %1, %c3_i32 : i32
    %c0_i32 = arith.constant 0 : i32
    %c0_i32_0 = arith.constant 0 : i32
    return %2, %c0_i32 : i32, i32
  }
  func.func @transform_1(%arg0: i32, %arg1: i32) -> (i32, i32) {
    %c2_i32 = arith.constant 2 : i32
    %0 = arith.muli %arg0, %c2_i32 : i32
    %1 = arith.addi %0, %arg1 : i32
    %c3_i32 = arith.constant 3 : i32
    %2 = arith.minsi %1, %c3_i32 : i32
    %c0_i32 = arith.constant 0 : i32
    %c0_i32_0 = arith.constant 0 : i32
    return %2, %c0_i32 : i32, i32
  }
  func.func @transform_2(%arg0: i32, %arg1: i32) -> (i32, i32) {
    %c0_i32 = arith.constant 0 : i32
    %c0_i32_0 = arith.constant 0 : i32
    %c0_i32_1 = arith.constant 0 : i32
    return %c0_i32, %c0_i32_0 : i32, i32
  }
  func.func @transform_3(%arg0: i32, %arg1: i32) -> (i32, i32, i32) {
    %c0_i32 = arith.constant 0 : i32
    %c0_i32_0 = arith.constant 0 : i32
    %c0_i32_1 = arith.constant 0 : i32
    return %arg0, %c0_i32, %c0_i32_0 : i32, i32, i32
  }
}

</mosaic_0001>

<llo_original>
// kernel: tpu_custom_call.1
$region0: #{tpu_custom_call.1}
  #allocation0 [shape = 'u32[]', space=smem, size = 0x4, offset = 0x4, fixed_abs, tag = 'smem constant byte address 0x4 - core index']
  #allocation1 [shape = 'u32[72,128]{1,0:T(1,128)}', space=vmem, size = 0x9000, scoped, tag = 'internal scratch']
  #allocation2 [shape = 'f32[1,1]{1,0:T(1,128)}', space=vmem, size = 0x200, scoped, tag = 'scratch operand']
  %s0 = inlined_call_operand.vmem [shape: f32[30,8], index: 0, kind: input, shape index: {}]
  %s1 = inlined_call_operand.vmem [shape: s32[30,1], index: 1, kind: input, shape index: {}]
  %s2 = inlined_call_operand.vmem [shape: f32[1,8], index: 2, kind: input, shape index: {}]
  %s3 = inlined_call_operand.vmem [shape: f32[2,1,1], index: 3, kind: output, shape index: {}]
  %s4 = sld [smem:[#allocation0]]
  $region53: #{tpu_custom_call.1} parent=0
    _
  %s6 = ssub.s32 1, %s4
  %s7 = scalar_select 0, %s6, %s4
  loop: start=0, step=1, limit=6
  $region2: #{tpu_custom_call.1} parent=0 // loop_pre_header
    _
  $region3: #{tpu_custom_call.1} parent=0 // loop_header
    %s9 = sphi 0, %s13
    %p10 = scmp.ge.s32.totalorder %s9, 6
    %s16 = sphi 0, %s28
    %s17 = sphi 0, %s24
    %s18 = sphi 0, %s16
    %s19 = sphi 0, %s17
    %s20 = sphi 0, %s18
    %s21 = sphi 0, %s19
    %s39 = sphi 0, %s41
    %s42 = sphi 0, %s39
    %s43 = sphi 0, %s42
    %s59 = sphi 0, %s43
    %s73 = sphi 0, %s75
    %s76 = sphi 0, %s73
    %s77 = sphi 0, %s76
    %s93 = sphi 0, %s77
    %s97 = sphi 0, %s97
    %s99 = sphi 0, %s97
    %s100 = sphi 0, %s99
    %s114 = sphi 0, %s100
    %s120 = sphi 0, %s122
    %s123 = sphi 0, %s120
    %s124 = sphi 0, %s123
    %s140 = sphi 0, %s124
  $region4: #{tpu_custom_call.1} parent=0 // loop_header_branch
    %12 = sbr.rel (%p10) target = $region8
  $region5: #{tpu_custom_call.1} parent=0 // loop_body
    %s14 = ssub.s32 %s9, 1
    %s15 = ssub.s32 %s9, 2
    %s22 = sadd.s32 1, %s17
    %p23 = scmp.ge.s32.totalorder %s22, 2
    %s24 = scalar_select %p23, 0, %s22
    %s25 = sadd.s32 1, %s16
    %s26 = scalar_select %p23, %s25, %s16
    %p27 = scmp.ge.s32.totalorder %s26, 2
    %s28 = scalar_select %p27, 0, %s26
    %s29 = smul.u32 %s16, 2
    %s30 = sadd.s32 %s29, %s17
    %p31 = scmp.lt.s32.totalorder %s30, 3
    %s32 = scalar_select %p31, %s30, 3
    %s33 = smul.u32 %s28, 2
    %s34 = sadd.s32 %s33, %s24
    %p35 = scmp.lt.s32.totalorder %s34, 3
    %s36 = scalar_select %p35, %s34, 3
    %s37 = ssub.s32 %s32, %s36
    %p38 = scmp.eq.s32.totalorder %s37, 0
    %s40 = sadd.s32 %s39, 1
    %s41 = scalar_select %p38, %s39, %s40
    %p44 = pneg %p38
    %p45 = scmp.eq.s32.totalorder %s9, 3
    %p46 = por %p44, %p45
    %p47 = scmp.ne.s32.totalorder %s39, %s42
    %p48 = scmp.eq.s32.totalorder %s9, 0
    %p49 = por %p47, %p48
    %p50 = scmp.ne.s32.totalorder %s39, %s42
    %p51 = scmp.eq.s32.totalorder %s14, 3
    %p52 = por %p50, %p51
    %p53 = scmp.ne.s32.totalorder %s42, %s43
    %p54 = scmp.eq.s32.totalorder %s14, 0
    %p55 = por %p53, %p54
    %p56 = scmp.ne.s32.totalorder %s42, %s43
    %p57 = scmp.eq.s32.totalorder %s15, 3
    %p58 = por %p56, %p57
    %p60 = scmp.ne.s32.totalorder %s43, %s59
    %p61 = scmp.eq.s32.totalorder %s15, 0
    %p62 = por %p60, %p61
    %s63 = smul.u32 %s16, 2
    %s64 = sadd.s32 %s63, %s17
    %p65 = scmp.lt.s32.totalorder %s64, 3
    %s66 = scalar_select %p65, %s64, 3
    %s67 = smul.u32 %s28, 2
    %s68 = sadd.s32 %s67, %s24
    %p69 = scmp.lt.s32.totalorder %s68, 3
    %s70 = scalar_select %p69, %s68, 3
    %s71 = ssub.s32 %s66, %s70
    %p72 = scmp.eq.s32.totalorder %s71, 0
    %s74 = sadd.s32 %s73, 1
    %s75 = scalar_select %p72, %s73, %s74
    %p78 = pneg %p72
    %p79 = scmp.eq.s32.totalorder %s9, 3
    %p80 = por %p78, %p79
    %p81 = scmp.ne.s32.totalorder %s73, %s76
    %p82 = scmp.eq.s32.totalorder %s9, 0
    %p83 = por %p81, %p82
    %p84 = scmp.ne.s32.totalorder %s73, %s76
    %p85 = scmp.eq.s32.totalorder %s14, 3
    %p86 = por %p84, %p85
    %p87 = scmp.ne.s32.totalorder %s76, %s77
    %p88 = scmp.eq.s32.totalorder %s14, 0
    %p89 = por %p87, %p88
    %p90 = scmp.ne.s32.totalorder %s76, %s77
    %p91 = scmp.eq.s32.totalorder %s15, 3
    %p92 = por %p90, %p91
    %p94 = scmp.ne.s32.totalorder %s77, %s93
    %p95 = scmp.eq.s32.totalorder %s15, 0
    %p96 = por %p94, %p95
    %s98 = sadd.s32 %s97, 1
    %p101 = scmp.eq.s32.totalorder %s9, 3
    %p102 = scmp.ne.s32.totalorder %s97, %s99
    %p103 = scmp.eq.s32.totalorder %s9, 0
    %p104 = por %p102, %p103
    %p105 = scmp.ne.s32.totalorder %s97, %s99
    %p106 = scmp.eq.s32.totalorder %s14, 3
    %p107 = por %p105, %p106
    %p108 = scmp.ne.s32.totalorder %s99, %s100
    %p109 = scmp.eq.s32.totalorder %s14, 0
    %p110 = por %p108, %p109
    %p111 = scmp.ne.s32.totalorder %s99, %s100
    %p112 = scmp.eq.s32.totalorder %s15, 3
    %p113 = por %p111, %p112
    %p115 = scmp.ne.s32.totalorder %s100, %s114
    %p116 = scmp.eq.s32.totalorder %s15, 0
    %p117 = por %p115, %p116
    %s118 = ssub.s32 %s16, %s28
    %p119 = scmp.eq.s32.totalorder %s118, 0
    %s121 = sadd.s32 %s120, 1
    %s122 = scalar_select %p119, %s120, %s121
    %p125 = pneg %p119
    %p126 = scmp.eq.s32.totalorder %s9, 3
    %p127 = por %p125, %p126
    %p128 = scmp.ne.s32.totalorder %s120, %s123
    %p129 = scmp.eq.s32.totalorder %s9, 0
    %p130 = por %p128, %p129
    %p131 = scmp.ne.s32.totalorder %s120, %s123
    %p132 = scmp.eq.s32.totalorder %s14, 3
    %p133 = por %p131, %p132
    %p134 = scmp.ne.s32.totalorder %s123, %s124
    %p135 = scmp.eq.s32.totalorder %s14, 0
    %p136 = por %p134, %p135
    %p137 = scmp.ne.s32.totalorder %s123, %s124
    %p138 = scmp.eq.s32.totalorder %s15, 3
    %p139 = por %p137, %p138
    %p141 = scmp.ne.s32.totalorder %s124, %s140
    %p142 = scmp.eq.s32.totalorder %s15, 0
    %p143 = por %p141, %p142
    %p144 = scmp.le.s32.totalorder 1, %s9
    %p145 = scmp.lt.s32.totalorder %s9, 5
    %p146 = pnand %p144, %p145
    %p147 = pneg %p146
    // Predicated region
    $region9: #{tpu_custom_call.1} parent=5 // pred_check
      _
    $region10: #{tpu_custom_call.1} parent=5 // pred_check_branch
      %149 = sbr.rel (%p146) target = $region12
    $region11: #{tpu_custom_call.1} parent=5 // pred_region
      %s150 = ssub.s32 %s9, 1
      // Predicated region
      $region13: #{tpu_custom_call.1} parent=11 // pred_check
        %p151 = pneg %p110
      $region14: #{tpu_custom_call.1} parent=11 // pred_check_branch
        %153 = sbr.rel (%p151) target = $region16
      $region15: #{tpu_custom_call.1} parent=11 // pred_region
        _
      $region16: #{tpu_custom_call.1} parent=11 // pred_fallthru
        _
    $region12: #{tpu_custom_call.1} parent=5 // pred_fallthru
      _
    %p154 = scmp.lt.s32.totalorder %s9, 4
    // Predicated region
    $region17: #{tpu_custom_call.1} parent=5 // pred_check
      %p155 = pneg %p154
    $region18: #{tpu_custom_call.1} parent=5 // pred_check_branch
      %157 = sbr.rel (%p155) target = $region20
    $region19: #{tpu_custom_call.1} parent=5 // pred_region
      // Predicated region
      $region21: #{tpu_custom_call.1} parent=19 // pred_check
        %p158 = pneg %p49
      $region22: #{tpu_custom_call.1} parent=19 // pred_check_branch
        %160 = sbr.rel (%p158) target = $region24
      $region23: #{tpu_custom_call.1} parent=19 // pred_region
        %s161 = smul.u32 %s16, 2
        %s162 = sadd.s32 %s161, %s17
        %p163 = scmp.lt.s32.totalorder %s162, 3
        %s164 = scalar_select %p163, %s162, 3
        %p165 = scmp.lt.s32.totalorder %s164, 3
        %s166 = scalar_select %p165, %s164, 3
        %s167 = smul.addr %s166, 8
        %s168 = scalar_lea.vmem %s0, %s167
        %s169 = smul.u32 %s16, 2
        %s170 = sadd.s32 %s169, %s17
        %p171 = scmp.lt.s32.totalorder %s170, 3
        %s172 = scalar_select %p171, %s170, 3
      $region24: #{tpu_custom_call.1} parent=19 // pred_fallthru
        _
      // Predicated region
      $region25: #{tpu_custom_call.1} parent=19 // pred_check
        %p173 = pneg %p83
      $region26: #{tpu_custom_call.1} parent=19 // pred_check_branch
        %175 = sbr.rel (%p173) target = $region28
      $region27: #{tpu_custom_call.1} parent=19 // pred_region
        %s176 = smul.u32 %s16, 2
        %s177 = sadd.s32 %s176, %s17
        %p178 = scmp.lt.s32.totalorder %s177, 3
        %s179 = scalar_select %p178, %s177, 3
        %p180 = scmp.lt.s32.totalorder %s179, 3
        %s181 = scalar_select %p180, %s179, 3
        %s182 = smul.addr %s181, 8
        %s183 = scalar_lea.vmem %s1, %s182
        %s184 = smul.u32 %s16, 2
        %s185 = sadd.s32 %s184, %s17
        %p186 = scmp.lt.s32.totalorder %s185, 3
        %s187 = scalar_select %p186, %s185, 3
      $region28: #{tpu_custom_call.1} parent=19 // pred_fallthru
        _
    $region20: #{tpu_custom_call.1} parent=5 // pred_fallthru
      _
    %p188 = scmp.le.s32.totalorder 1, %s9
    %p189 = scmp.lt.s32.totalorder %s9, 5
    %p190 = pnand %p188, %p189
    %p191 = pneg %p190
    // Predicated region
    $region29: #{tpu_custom_call.1} parent=5 // pred_check
      _
    $region30: #{tpu_custom_call.1} parent=5 // pred_check_branch
      %193 = sbr.rel (%p190) target = $region32
    $region31: #{tpu_custom_call.1} parent=5 // pred_region
      %s194 = ssub.s32 %s9, 1
      %s195 = smul.u32 %s18, 2
      %s196 = sadd.s32 %s195, %s19
      %p197 = scmp.lt.s32.totalorder %s196, 3
      %s198 = scalar_select %p197, %s196, 3
      %p199 = scmp.lt.s32.totalorder %s198, 3
      %s200 = scalar_select %p199, %s198, 3
      %s201 = smul.addr %s200, 8
      %s202 = scalar_lea.vmem %s0, %s201
      %p203 = pneg %p55
      %p204 = pneg %p52
      %s205 = smul.u32 %s18, 2
      %s206 = sadd.s32 %s205, %s19
      %p207 = scmp.lt.s32.totalorder %s206, 3
      %s208 = scalar_select %p207, %s206, 3
      %p209 = scmp.lt.s32.totalorder %s208, 3
      %s210 = scalar_select %p209, %s208, 3
      %s211 = smul.addr %s210, 8
      %s212 = scalar_lea.vmem %s1, %s211
      %p213 = pneg %p89
      %p214 = pneg %p86
      %p215 = pneg %p110
      %p216 = pneg %p107
      %p217 = pneg %p136
      %p218 = pneg %p133
      %p219 = scmp.lt.s32.totalorder %s18, 1
      %s220 = scalar_select %p219, %s18, 1
      %s221 = scalar_lea.vmem %s3, %s220
      %s222 = smul.u32 %s18, 2
      %s223 = sadd.s32 %s222, %s19
      %p224 = scmp.lt.s32.totalorder %s223, 3
      %s225 = scalar_select %p224, %s223, 3
      %p226 = scmp.lt.s32.totalorder %s225, 3
      %s227 = scalar_select %p226, %s225, 3
      %s228 = smul.addr %s227, 8
      %s229 = scalar_lea.vmem %s0, %s228
      %s230 = smul.u32 %s18, 2
      %s231 = sadd.s32 %s230, %s19
      %p232 = scmp.lt.s32.totalorder %s231, 3
      %s233 = scalar_select %p232, %s231, 3
      %s234 = smul.u32 %s18, 2
      %s235 = sadd.s32 %s234, %s19
      %p236 = scmp.lt.s32.totalorder %s235, 3
      %s237 = scalar_select %p236, %s235, 3
      %p238 = scmp.lt.s32.totalorder %s237, 3
      %s239 = scalar_select %p238, %s237, 3
      %s240 = smul.addr %s239, 8
      %s241 = scalar_lea.vmem %s1, %s240
      %s242 = smul.u32 %s18, 2
      %s243 = sadd.s32 %s242, %s19
      %p244 = scmp.lt.s32.totalorder %s243, 3
      %s245 = scalar_select %p244, %s243, 3
      %p246 = scmp.lt.s32.totalorder %s18, 1
      %s247 = scalar_select %p246, %s18, 1
      %s248 = scalar_lea.vmem %s3, %s247
      %p249 = scmp.eq.s32.totalorder %s19, 0
      // Predicated region
      $region33: #{tpu_custom_call.1} parent=31 // pred_check
        %p250 = pneg %p249
      $region34: #{tpu_custom_call.1} parent=31 // pred_check_branch
        %252 = sbr.rel (%p250) target = $region36
      $region35: #{tpu_custom_call.1} parent=31 // pred_region
        %vm253 = vcmask 0
        %254 = vst.msk [vmem:[#allocation2] sm:$0x1] %vm253, 0.0
      $region36: #{tpu_custom_call.1} parent=31 // pred_fallthru
        _
      %v255 = vld [vmem:[%s229] sm:$0xff]
      %v256 = vld [vmem:[%s241] sm:$0xff]
      %v257 = vld [vmem:[%s2] sm:$0x1]
      %vm258 = vcmask 64512
      %v259 = vsel %vm258, %v255, -inf
      %260 = vmax.xlane.f32.xlu0 %v259
      %v261 = vpop.xlane.xlu0 %260
      %v262 = vsub.f32 %v255, %v261
      %v263 = vmul.f32 %v262, 1.442695
      %v264 = vpow.pop %v263
      %v265 = vsel %vm258, %v264, 0.0
      %266 = vadd.xlane.f32.xlu0 %v265
      %v267 = vpop.xlane.xlu0 %266
      %v268 = vlog2.pop %v267
      %v269 = vmul.f32 %v268, 0.6931472
      %v270 = vsub.f32 %v262, %v269
      %v271 = vlaneseq
      %v272 = vand.u32 %v271, 127
      %273 = vset.pattern.permute.xlu0 0
      %274 = vperm.xlu0 %273, %v256
      %v275 = vpop.permute.xlu0 %274
      %vm276 = vcmp.eq.s32.totalorder %v272, %v275
      %v278 = vperm.slane %v257, 0
      %v280 = vmul.f32 %v278, %v270
      %v281 = vsel %vm276, %v280, 0.0
      %v282 = vsel %vm258, %v281, 0.0
      %283 = vadd.xlane.f32.xlu0 %v282
      %v284 = vpop.xlane.xlu0 %283
      %v285 = vsub.f32 0.0, %v284
      %v286 = vsub.f32 0.0, %v285
      %v287 = vmul.f32 %v286, 1.442695
      %v288 = vpow.pop %v287
      %v289 = vsub.f32 1.0, %v288
      %v290 = vmax.f32 %v289, 0.0
      %v291 = vmul.f32 %v290, %v290
      %v292 = vmul.f32 %v291, %v285
      %s293 = smul.u32 %s18, 2
      %s294 = sadd.s32 %s293, %s19
      %v295 = vlaneseq
      %v296 = vshrl.u32 %v295, 7
      %s297 = smul.u32 %s294, 8
      %v298 = vstv %s297
      %v299 = vadd.s32 %v298, %v296
      %vm300 = vcmp.lt.s32.totalorder %v299, 30
      %v301 = vsel %vm300, %v292, 0.0
      %v302 = vld [vmem:[#allocation2] sm:$0x1]
      %v303 = vrot.slane %v301, 4
      %v304 = vadd.f32 %v301, %v303
      %v305 = vrot.slane %v304, 2
      %v306 = vadd.f32 %v304, %v305
      %v307 = vrot.slane %v306, 1
      %v308 = vadd.f32 %v306, %v307
      %v309 = vadd.f32 %v302, %v308
      %vm310 = vcmask 0
      %311 = vst.msk [vmem:[#allocation2] sm:$0x1] %vm310, %v309
      %p312 = scmp.eq.s32.totalorder %s19, 1
      // Predicated region
      $region37: #{tpu_custom_call.1} parent=31 // pred_check
        %p313 = pneg %p312
      $region38: #{tpu_custom_call.1} parent=31 // pred_check_branch
        %315 = sbr.rel (%p313) target = $region40
      $region39: #{tpu_custom_call.1} parent=31 // pred_region
        %v316 = vld [vmem:[#allocation2] sm:$0x1]
        %317 = vst.msk [vmem:[%s248] sm:$0x1] %vm310, %v316
      $region40: #{tpu_custom_call.1} parent=31 // pred_fallthru
        _
      %p318 = scmp.lt.s32.totalorder %s18, 1
      %s319 = scalar_select %p318, %s18, 1
      %s320 = scalar_lea.vmem %s3, %s319
      // Predicated region
      $region41: #{tpu_custom_call.1} parent=31 // pred_check
        %p321 = pneg %p133
      $region42: #{tpu_custom_call.1} parent=31 // pred_check_branch
        %323 = sbr.rel (%p321) target = $region44
      $region43: #{tpu_custom_call.1} parent=31 // pred_region
        _
      $region44: #{tpu_custom_call.1} parent=31 // pred_fallthru
        _
    $region32: #{tpu_custom_call.1} parent=5 // pred_fallthru
      _
    %p324 = scmp.le.s32.totalorder 2, %s9
    // Predicated region
    $region45: #{tpu_custom_call.1} parent=5 // pred_check
      %p325 = pneg %p324
    $region46: #{tpu_custom_call.1} parent=5 // pred_check_branch
      %327 = sbr.rel (%p325) target = $region48
    $region47: #{tpu_custom_call.1} parent=5 // pred_region
      %s328 = ssub.s32 %s9, 2
      // Predicated region
      $region49: #{tpu_custom_call.1} parent=47 // pred_check
        %p329 = pneg %p139
      $region50: #{tpu_custom_call.1} parent=47 // pred_check_branch
        %331 = sbr.rel (%p329) target = $region52
      $region51: #{tpu_custom_call.1} parent=47 // pred_region
        %p332 = scmp.lt.s32.totalorder %s20, 1
        %s333 = scalar_select %p332, %s20, 1
        %s334 = scalar_lea.vmem %s3, %s333
      $region52: #{tpu_custom_call.1} parent=47 // pred_fallthru
        _
    $region48: #{tpu_custom_call.1} parent=5 // pred_fallthru
      _
  $region6: #{tpu_custom_call.1} parent=0 // loop_footer
    %s13 = sadd.s32 1, %s9
  $region7: #{tpu_custom_call.1} parent=0 // loop_footer_branch
    %8 = sbr.rel target = $region3
  $region8: #{tpu_custom_call.1} parent=0 // loop_exit
    _

</llo_original>
